<compile_context>
chip_gen: v7x
topology: tpu7x:2x2x1
jax: 0.10.0
libtpu: 0.0.40
codegen_flags: <defaults>
</compile_context>

<pallas_src>
import functools

import jax
import jax.numpy as jnp
from jax.experimental import pallas as pl
from jax.experimental.pallas import tpu as pltpu


def _vmem_capacity_bytes():
    """Physical per-core VMEM; conservative v7x fallback if the query is unavailable."""
    try:
        info = pltpu.get_tpu_info()
        for attr in ("vmem_capacity_bytes", "vmem_bytes"):
            v = getattr(info, attr, None)
            if v:
                return int(v)
    except Exception:
        pass
    return 64 * 1024 * 1024


def _make_constants(g, kh, kw, W, Wp):
    """Grid-invariant constants hoisted out of the kernel body.

    Returns:
      sel3   : (3*g*Wp, g*kh*W) bf16 one-hot upsample selector, stacked x3 so the 3-limb
               bf16 split of the pooled ratio contracts in a single MXU pass.
      masks  : (n_shift, g*kh*W) f32; masks[i] != 0 marks lanes whose rolled neighbour
               (roll i) lies inside the same pooling window.
      shifts1, shifts2 : static roll amounts (pool-row direction / pool-col direction).
    """
    L = g * kh * W
    Pw = g * Wp
    q = jnp.arange(L)
    # output lane q = j*kh*W + a*W + x  ->  pooled-ratio lane j*Wp + x//kw
    src = (q // (kh * W)) * Wp + (q % W) // kw
    sel = (src[None, :] == jnp.arange(Pw)[:, None]).astype(jnp.bfloat16)   # (Pw, L)
    sel3 = jnp.concatenate([sel, sel, sel], axis=0)                        # (3*Pw, L)

    a_idx = (q // W) % kh          # row offset inside the pooling window
    x_kw = q % kw                  # column offset inside the pooling window
    rows, shifts1, shifts2 = [], [], []
    for s in range(1, kh):         # pool-row direction (stride of W lanes)
        shifts1.append(int((L - s * W) % L)); rows.append(a_idx + s < kh)  # neighbour q + s*W
        shifts1.append(int(s * W));           rows.append(a_idx >= s)      # neighbour q - s*W
    for s in range(1, kw):         # pool-column direction (stride of 1 lane)
        shifts2.append(int((L - s) % L)); rows.append(x_kw + s < kw)       # neighbour q + s
        shifts2.append(int(s));           rows.append(x_kw >= s)           # neighbour q - s
    masks = (jnp.stack(rows).astype(jnp.float32) if rows
             else jnp.zeros((1, L), jnp.float32))
    return sel3, masks, tuple(shifts1), tuple(shifts2)


def _lrp_maxpool_bn_relu_kernel(sel_ref, masks_ref, w_ref, rk_ref, ak_ref, aj_ref,
                                out_ref, *, e, shifts1, shifts2):
    """One (batch, channel-tile) block.  R = c_tile*(Hp//g), Pw = g*Wp, L = g*kh*W.

      sel_ref  : (3*Pw, L)  bf16 stacked one-hot upsample selector (resident constant)
      masks_ref: (nm, L)    f32  roll-validity masks (resident constant)
      w_ref    : (R, 1)     f32  fused BN scale per (channel, pooled-row group)
      rk_ref   : (1, R, Pw)      relevance at the block (ReLU) output, pooled resolution
      ak_ref   : (1, R, Pw)      BN output (pre-ReLU), pooled resolution
      aj_ref   : (1, R, L)       pool input, lane = j*kh*W + a*W + x
      out_ref  : (1, R, L)       relevance at the pool input, same packing as aj_ref
    """
    f32 = jnp.float32
    w = w_ref[...]                                  # (R, 1) f32
    rk = rk_ref[0].astype(f32)                      # (R, Pw)
    ak = ak_ref[0].astype(f32)                      # (R, Pw)
    aj = aj_ref[0]                                  # (R, L), kept in the input dtype

    # ---- LRP-eps ratio at pooled resolution (BN scale fused, bias absorbed in aK) ----
    # Exact division on purpose (LRP numerics), not pl.reciprocal(approx=True).
    stab = jnp.where(ak >= 0.0, 1.0, -1.0)
    u = rk * w / (ak + e * stab)                    # (R, Pw) f32

    # ---- upsample u directly into the output layout with ONE MXU pass ----------------
    # u is split into 3 bf16 limbs; each dot term is exact (bf16 * {0,1}, f32 accumulate),
    # so u_up matches u to ~1 ulp regardless of the MXU's f32 emulation mode.
    hi = u.astype(jnp.bfloat16)
    r1 = u - hi.astype(f32)
    mid = r1.astype(jnp.bfloat16)
    lo = (r1 - mid.astype(f32)).astype(jnp.bfloat16)
    limbs = jnp.concatenate([hi, mid, lo], axis=1)                         # (R, 3*Pw)
    u_up = jnp.dot(limbs, sel_ref[...], preferred_element_type=f32)        # (R, L)

    # ---- winner-take-all mask: recompute the kh x kw window max from aJ ---------------
    # Exact (same dtype as aJ, so bit-identical to upsampling the forward max-pool
    # output); done with XLU rotates + hoisted (1, L) lane masks, no per-step iotas.
    masks = masks_ref[...]
    gm = aj
    for i, sh in enumerate(shifts1):                # max over the kh row offsets
        valid = masks[i:i + 1, :] != 0.0
        gm = jnp.where(valid, jnp.maximum(gm, pltpu.roll(aj, shift=sh, axis=1)), gm)
    gm1 = gm
    for j, sh in enumerate(shifts2):                # max over the kw column offsets
        valid = masks[len(shifts1) + j:len(shifts1) + j + 1, :] != 0.0
        gm = jnp.where(valid, jnp.maximum(gm, pltpu.roll(gm1, shift=sh, axis=1)), gm)

    # route the relevance to the winning element(s); cast aJ to f32 only for the product
    out = jnp.where(aj == gm, aj.astype(f32) * u_up, 0.0)
    out_ref[0] = out.astype(out_ref.dtype)


def multi_block_maxpool_bn_relu(rK, aJ, aK, aKPool, *, gamma, running_var, bn_eps,
                                pool_kernel, pool_stride, e, Ch0=0, Ch1=None):
    # aKPool (forward max-pool output) is not re-read: the kernel recomputes the identical
    # window max from aJ with XLU rotates, which removes one HBM input stream and keeps the
    # equality compare exact on every generation.
    del aKPool
    if Ch1 is None:
        Ch1 = aK.shape[1]
    N, C, H, W = aJ.shape
    kh, kw = pool_kernel if isinstance(pool_kernel, (tuple, list)) else (pool_kernel, pool_kernel)
    sh_, sw_ = pool_stride if isinstance(pool_stride, (tuple, list)) else (pool_stride, pool_stride)
    # TODO(synk): overlapping / padded MaxPool (e.g. DenseNet's 3x3 stride-2 pad-1 stem pool)
    # needs an unpool scatter and is not expressible with this non-overlapping window kernel.
    assert (kh, kw) == (sh_, sw_), "non-overlapping pooling (stride == kernel) assumed"
    assert H % kh == 0 and W % kw == 0, "spatial dims must be divisible by the pool window"
    assert Ch1 - Ch0 == C, "channel slice [Ch0:Ch1] must match the pool-input channel count"
    Hp, Wp = H // kh, W // kw

    # ---- pooled-row group size g: fold g pooled rows into the lane axis so the output
    # block's lane width L = g*kh*W is a multiple of 128 (unmasked vector stores) --------
    divs_hp = [d for d in range(1, Hp + 1) if Hp % d == 0]
    g_cands = [d for d in divs_hp if (d * kh * W) % 128 == 0]
    if g_cands:
        g = min(g_cands)
    else:
        big = [d for d in divs_hp if d * kh * W >= 128]
        g = min(big) if big else Hp
    L = g * kh * W
    Pw = g * Wp
    rows_per_ch = Hp // g

    itemsize = jnp.dtype(aJ.dtype).itemsize
    sub_align = {4: 8, 2: 16, 1: 32}.get(itemsize, 8)   # dtype-aware sublane packing

    # ---- generation-aware block / VMEM budgets (v5e/v6e: 64 MiB limit, v7x: 48 MiB) ----
    phys_vmem = _vmem_capacity_bytes()
    vmem_limit = min(64 * 1024 * 1024, (3 * phys_vmem) // 4)
    block_budget = max(1_500_000, vmem_limit // 12)     # double-buffered I/O + f32 temps

    per_ch = itemsize * (2 * H * W + 2 * Hp * Wp)       # aJ + rJ + rK + aK bytes per channel
    divisors = [d for d in range(1, C + 1) if C % d == 0]
    aligned = [d for d in divisors if (d * rows_per_ch) % sub_align == 0]
    if aligned:
        cand = [d for d in aligned if d * per_ch <= block_budget] or [min(aligned)]
        multi = [d for d in cand if N * (C // d) >= 2]  # keep >=2 programs (megacore / v7x)
        c_tile = max(multi) if multi else max(cand)
        fold_slice_ok = True
    else:
        c_tile = C                                      # full-extent blocks (always legal)
        fold_slice_ok = False
    R = c_tile * rows_per_ch

    # fused BN scale, replicated per (channel, pooled-row group) so it broadcasts on the VPU
    w = (gamma[Ch0:Ch1].astype(jnp.float32)
         / jnp.sqrt(running_var[Ch0:Ch1].astype(jnp.float32) + bn_eps))
    w_rows = jnp.repeat(w, rows_per_ch)[:, None]        # (C*rows_per_ch, 1)

    # lane-dense, transpose-free presentations (pure reshapes of contiguous data -> free)
    aj_r = aJ.reshape(N, C * rows_per_ch, L)            # row = c*rpc + ib, lane = j*kh*W + a*W + x
    Ct = rK.shape[1]
    if fold_slice_ok and Ch0 % c_tile == 0 and aK.shape[1] == Ct:
        # fold the [Ch0:Ch1] slice into the index_map -> no XLA slice copy of rK / aK
        rk_r = rK.reshape(N, Ct * rows_per_ch, Pw)
        ak_r = aK.reshape(N, Ct * rows_per_ch, Pw)
        ch_blk_off = Ch0 // c_tile
    else:
        rk_r = rK[:, Ch0:Ch1].reshape(N, C * rows_per_ch, Pw)
        ak_r = aK[:, Ch0:Ch1].reshape(N, C * rows_per_ch, Pw)
        ch_blk_off = 0

    # hoisted grid-invariant constants (DMA'd once, stay resident across the whole grid)
    sel3, masks, shifts1, shifts2 = _make_constants(g, kh, kw, W, Wp)
    nm = masks.shape[0]

    kernel = functools.partial(_lrp_maxpool_bn_relu_kernel,
                               e=float(e), shifts1=shifts1, shifts2=shifts2)

    out_r = pl.pallas_call(
        kernel,
        out_shape=jax.ShapeDtypeStruct((N, C * rows_per_ch, L), aJ.dtype),
        grid=(N, C // c_tile),
        in_specs=[
            pl.BlockSpec((3 * Pw, L), lambda n, ci: (0, 0)),                  # upsample selector
            pl.BlockSpec((nm, L), lambda n, ci: (0, 0)),                      # roll masks
            pl.BlockSpec((R, 1), lambda n, ci: (ci, 0)),                      # BN scale rows
            pl.BlockSpec((1, R, Pw), lambda n, ci: (n, ci + ch_blk_off, 0)),  # rK rows
            pl.BlockSpec((1, R, Pw), lambda n, ci: (n, ci + ch_blk_off, 0)),  # aK rows
            pl.BlockSpec((1, R, L), lambda n, ci: (n, ci, 0)),                # aJ rows
        ],
        out_specs=pl.BlockSpec((1, R, L), lambda n, ci: (n, ci, 0)),
        compiler_params=pltpu.CompilerParams(
            dimension_semantics=("parallel", "parallel"),
            vmem_limit_bytes=int(vmem_limit)),
    )(sel3, masks, w_rows, rk_r, ak_r, aj_r)

    return out_r.reshape(N, C, H, W)                     # pure reshape back to NCHW (free)


class MultiBlockMaxPoolBNReLU:
    """JAX/Pallas equivalent of ISNetLayers.MultiBlockMaxPoolBNReLU.

    The torch module wraps (layer=nn.MaxPool2d, BN=nn.BatchNorm2d); here the relevant
    parameters are passed explicitly.  beta / running_mean are kept for parity with
    nn.BatchNorm2d but are unused by the LRP-epsilon rule (bias absorbed in aK).
    """

    def __init__(self, pool_kernel, pool_stride, gamma, beta, running_mean,
                 running_var, bn_eps, e, Ch0=0, Ch1=None):
        self.pool_kernel = pool_kernel
        self.pool_stride = pool_stride
        self.gamma = gamma
        self.beta = beta
        self.running_mean = running_mean
        self.running_var = running_var
        self.bn_eps = bn_eps
        self.e = e
        self.Ch = [Ch0, Ch1]

    def __call__(self, rK, aJ, aK, aKPool):
        return multi_block_maxpool_bn_relu(
            rK, aJ, aK, aKPool,
            gamma=self.gamma, running_var=self.running_var, bn_eps=self.bn_eps,
            pool_kernel=self.pool_kernel, pool_stride=self.pool_stride,
            e=self.e, Ch0=self.Ch[0], Ch1=self.Ch[1])


def _reference(rK, aJ, aK, aKPool, gamma, running_var, bn_eps, e, Ch0, Ch1, kh, kw):
    """Pure-JAX reference: LRP-eps through MaxPool -> BN -> ReLU (winner-take-all)."""
    w = gamma[Ch0:Ch1] / jnp.sqrt(running_var[Ch0:Ch1] + bn_eps)
    ak = aK[:, Ch0:Ch1]
    rk = rK[:, Ch0:Ch1]
    stab = jnp.where(ak >= 0.0, 1.0, -1.0)
    s = rk * w[None, :, None, None] / (ak + e * stab)
    s_up = jnp.repeat(jnp.repeat(s, kh, axis=2), kw, axis=3)
    mx_up = jnp.repeat(jnp.repeat(aKPool, kh, axis=2), kw, axis=3)
    # TODO(synk): ties are routed to every maximal element (measure-zero for float inputs);
    # torch's max_pool2d gradient routes to the first argmax only.
    return jnp.where(aJ == mx_up, aJ * s_up, jnp.zeros_like(aJ))


if __name__ == "__main__":
    key = jax.random.PRNGKey(0)
    N, Cpool, H, W = 2, 4, 16, 16          # pool-input (aJ) shape
    Ctotal = 12                            # concatenated channel count seen by the BN
    Ch0, Ch1 = 4, 8                        # where the pool output sits inside the concat
    kh = kw = 2
    Hp, Wp = H // kh, W // kw
    e = 0.01
    bn_eps = 1e-5

    k1, k2, k3 = jax.random.split(key, 3)
    aJ = jax.random.normal(k1, (N, Cpool, H, W), jnp.float32)

    # Consistent forward pieces: aKPool = MaxPool2d(2)(aJ); BN input = channel concat; aK = BN(concat).
    aKPool = aJ.reshape(N, Cpool, Hp, kh, Wp, kw).max(axis=(3, 5))
    other = jax.random.normal(k2, (N, Ctotal - Cpool, Hp, Wp), jnp.float32)
    bn_in = jnp.concatenate([other[:, :Ch0], aKPool, other[:, Ch0:]], axis=1)

    gamma = 0.5 + 0.1 * jnp.arange(Ctotal, dtype=jnp.float32)
    beta = 0.05 * jnp.arange(Ctotal, dtype=jnp.float32)
    running_mean = 0.02 * jnp.arange(Ctotal, dtype=jnp.float32)
    running_var = 1.0 + 0.1 * jnp.arange(Ctotal, dtype=jnp.float32)

    aK = ((gamma / jnp.sqrt(running_var + bn_eps))[None, :, None, None]
          * (bn_in - running_mean[None, :, None, None])
          + beta[None, :, None, None])
    # Relevance at the ReLU output (zero where the ReLU output is zero).
    rK = jax.random.uniform(k3, (N, Ctotal, Hp, Wp), jnp.float32) * (aK > 0).astype(jnp.float32)

    mod = MultiBlockMaxPoolBNReLU(pool_kernel=(kh, kw), pool_stride=(kh, kw),
                                  gamma=gamma, beta=beta,
                                  running_mean=running_mean, running_var=running_var,
                                  bn_eps=bn_eps, e=e, Ch0=Ch0, Ch1=Ch1)

    rJ = jax.block_until_ready(mod(rK, aJ, aK, aKPool))

    rJ_ref = _reference(rK, aJ, aK, aKPool, gamma, running_var, bn_eps, e, Ch0, Ch1, kh, kw)
    assert rJ.shape == aJ.shape, (rJ.shape, aJ.shape)
    assert jnp.allclose(rJ, rJ_ref, rtol=1e-5, atol=1e-6), float(jnp.max(jnp.abs(rJ - rJ_ref)))

    print("KERNEL_OK")
</pallas_src>

<mosaic_0001>
module attributes {stable_mosaic.version = 11 : i64} {
  func.func @_lrp_maxpool_bn_relu_kernel(%arg0: i32, %arg1: i32, %arg2: memref<96x128xbf16, #tpu.memory_space<vmem>>, %arg3: memref<4x128xf32, #tpu.memory_space<vmem>>, %arg4: memref<8x1xf32, #tpu.memory_space<vmem>>, %arg5: memref<1x8x32xf32, #tpu.memory_space<vmem>>, %arg6: memref<1x8x32xf32, #tpu.memory_space<vmem>>, %arg7: memref<1x8x128xf32, #tpu.memory_space<vmem>>, %arg8: memref<1x8x128xf32, #tpu.memory_space<vmem>>) attributes {dimension_semantics = [#tpu.dimension_semantics<parallel>, #tpu.dimension_semantics<parallel>], iteration_bounds = array<i64: 2, 1>, scalar_prefetch = 0 : i64, scratch_operands = 0 : i64, tpu.core_type = #tpu.core_type<tc>, window_params = [{pipeline_mode = #tpu.pipeline_mode<synchronous>, transform_indices = @transform_0, window_bounds = array<i64: 96, 128>}, {pipeline_mode = #tpu.pipeline_mode<synchronous>, transform_indices = @transform_1, window_bounds = array<i64: 4, 128>}, {transform_indices = @transform_2, window_bounds = array<i64: 8, 1>}, {transform_indices = @transform_3, window_bounds = array<i64: 1, 8, 32>}, {transform_indices = @transform_4, window_bounds = array<i64: 1, 8, 32>}, {transform_indices = @transform_5, window_bounds = array<i64: 1, 8, 128>}, {transform_indices = @transform_6, window_bounds = array<i64: 1, 8, 128>}]} {
    %c0 = arith.constant 0 : index
    %c0_0 = arith.constant 0 : index
    %0 = vector.load %arg4[%c0, %c0_0] : memref<8x1xf32, #tpu.memory_space<vmem>>, vector<8x1xf32>
    %c0_1 = arith.constant 0 : index
    %c0_2 = arith.constant 0 : index
    %c0_3 = arith.constant 0 : index
    %1 = vector.load %arg5[%c0_1, %c0_2, %c0_3] : memref<1x8x32xf32, #tpu.memory_space<vmem>>, vector<1x8x32xf32>
    %2 = vector.shape_cast %1 : vector<1x8x32xf32> to vector<8x32xf32>
    %c0_4 = arith.constant 0 : index
    %c0_5 = arith.constant 0 : index
    %c0_6 = arith.constant 0 : index
    %3 = vector.load %arg6[%c0_4, %c0_5, %c0_6] : memref<1x8x32xf32, #tpu.memory_space<vmem>>, vector<1x8x32xf32>
    %4 = vector.shape_cast %3 : vector<1x8x32xf32> to vector<8x32xf32>
    %c0_7 = arith.constant 0 : index
    %c0_8 = arith.constant 0 : index
    %c0_9 = arith.constant 0 : index
    %5 = vector.load %arg7[%c0_7, %c0_8, %c0_9] : memref<1x8x128xf32, #tpu.memory_space<vmem>>, vector<1x8x128xf32>
    %6 = vector.shape_cast %5 : vector<1x8x128xf32> to vector<8x128xf32>
    %cst = arith.constant 0.000000e+00 : f32
    %7 = vector.broadcast %cst : f32 to vector<8x32xf32>
    %8 = arith.cmpf oge, %4, %7 : vector<8x32xf32>
    %cst_10 = arith.constant 1.000000e+00 : f32
    %cst_11 = arith.constant -1.000000e+00 : f32
    %9 = vector.broadcast %cst_10 : f32 to vector<8x32xf32>
    %10 = vector.broadcast %cst_11 : f32 to vector<8x32xf32>
    %11 = arith.select %8, %9, %10 : vector<8x32xi1>, vector<8x32xf32>
    %12 = vector.broadcast %0 : vector<8x1xf32> to vector<8x32xf32>
    %13 = arith.mulf %2, %12 : vector<8x32xf32>
    %cst_12 = arith.constant 0.00999999977 : f32
    %14 = vector.broadcast %cst_12 : f32 to vector<8x32xf32>
    %15 = arith.mulf %14, %11 : vector<8x32xf32>
    %16 = arith.addf %4, %15 : vector<8x32xf32>
    %17 = arith.divf %13, %16 : vector<8x32xf32>
    %18 = arith.truncf %17 : vector<8x32xf32> to vector<8x32xbf16>
    %19 = arith.extf %18 : vector<8x32xbf16> to vector<8x32xf32>
    %20 = arith.subf %17, %19 : vector<8x32xf32>
    %21 = arith.truncf %20 : vector<8x32xf32> to vector<8x32xbf16>
    %22 = arith.extf %21 : vector<8x32xbf16> to vector<8x32xf32>
    %23 = arith.subf %20, %22 : vector<8x32xf32>
    %24 = arith.truncf %23 : vector<8x32xf32> to vector<8x32xbf16>
    %25 = tpu.concatenate %18, %21, %24 in 1 : vector<8x32xbf16>, vector<8x32xbf16>, vector<8x32xbf16> -> vector<8x96xbf16>
    %c0_13 = arith.constant 0 : index
    %c0_14 = arith.constant 0 : index
    %26 = vector.load %arg2[%c0_13, %c0_14] : memref<96x128xbf16, #tpu.memory_space<vmem>>, vector<96x128xbf16>
    %cst_15 = arith.constant dense<0.000000e+00> : vector<8x128xf32>
    %27 = tpu.matmul %25, %26, %cst_15 {dimension_numbers = #tpu.dot_dimension_numbers<[1], [0], [0], [1], [0, 0, 1, 1], [], []>} : vector<8x96xbf16>, vector<96x128xbf16>, vector<8x128xf32> -> vector<8x128xf32>
    %c0_16 = arith.constant 0 : index
    %c0_17 = arith.constant 0 : index
    %28 = vector.load %arg3[%c0_16, %c0_17] : memref<4x128xf32, #tpu.memory_space<vmem>>, vector<4x128xf32>
    %29 = vector.extract_strided_slice %28 {offsets = [0, 0], sizes = [1, 128], strides = [1, 1]} : vector<4x128xf32> to vector<1x128xf32>
    %cst_18 = arith.constant 0.000000e+00 : f32
    %30 = vector.broadcast %cst_18 : f32 to vector<1x128xf32>
    %31 = arith.cmpf one, %29, %30 : vector<1x128xf32>
    %c112_i32 = arith.constant 112 : i32
    %32 = tpu.dynamic_rotate %6 by %c112_i32 dim 1 : vector<8x128xf32>, i32 -> vector<8x128xf32>
    %33 = arith.maximumf %6, %32 : vector<8x128xf32>
    %34 = vector.shape_cast %31 : vector<1x128xi1> to vector<1x128xi1>
    %35 = vector.broadcast %34 : vector<1x128xi1> to vector<8x128xi1>
    %36 = arith.select %35, %33, %6 : vector<8x128xi1>, vector<8x128xf32>
    %37 = vector.extract_strided_slice %28 {offsets = [1, 0], sizes = [1, 128], strides = [1, 1]} : vector<4x128xf32> to vector<1x128xf32>
    %cst_19 = arith.constant 0.000000e+00 : f32
    %38 = vector.broadcast %cst_19 : f32 to vector<1x128xf32>
    %39 = arith.cmpf one, %37, %38 : vector<1x128xf32>
    %c16_i32 = arith.constant 16 : i32
    %40 = tpu.dynamic_rotate %6 by %c16_i32 dim 1 : vector<8x128xf32>, i32 -> vector<8x128xf32>
    %41 = arith.maximumf %36, %40 : vector<8x128xf32>
    %42 = vector.shape_cast %39 : vector<1x128xi1> to vector<1x128xi1>
    %43 = vector.broadcast %42 : vector<1x128xi1> to vector<8x128xi1>
    %44 = arith.select %43, %41, %36 : vector<8x128xi1>, vector<8x128xf32>
    %45 = vector.extract_strided_slice %28 {offsets = [2, 0], sizes = [1, 128], strides = [1, 1]} : vector<4x128xf32> to vector<1x128xf32>
    %cst_20 = arith.constant 0.000000e+00 : f32
    %46 = vector.broadcast %cst_20 : f32 to vector<1x128xf32>
    %47 = arith.cmpf one, %45, %46 : vector<1x128xf32>
    %c127_i32 = arith.constant 127 : i32
    %48 = tpu.dynamic_rotate %44 by %c127_i32 dim 1 : vector<8x128xf32>, i32 -> vector<8x128xf32>
    %49 = arith.maximumf %44, %48 : vector<8x128xf32>
    %50 = vector.shape_cast %47 : vector<1x128xi1> to vector<1x128xi1>
    %51 = vector.broadcast %50 : vector<1x128xi1> to vector<8x128xi1>
    %52 = arith.select %51, %49, %44 : vector<8x128xi1>, vector<8x128xf32>
    %53 = vector.extract_strided_slice %28 {offsets = [3, 0], sizes = [1, 128], strides = [1, 1]} : vector<4x128xf32> to vector<1x128xf32>
    %cst_21 = arith.constant 0.000000e+00 : f32
    %54 = vector.broadcast %cst_21 : f32 to vector<1x128xf32>
    %55 = arith.cmpf one, %53, %54 : vector<1x128xf32>
    %c1_i32 = arith.constant 1 : i32
    %56 = tpu.dynamic_rotate %44 by %c1_i32 dim 1 : vector<8x128xf32>, i32 -> vector<8x128xf32>
    %57 = arith.maximumf %52, %56 : vector<8x128xf32>
    %58 = vector.shape_cast %55 : vector<1x128xi1> to vector<1x128xi1>
    %59 = vector.broadcast %58 : vector<1x128xi1> to vector<8x128xi1>
    %60 = arith.select %59, %57, %52 : vector<8x128xi1>, vector<8x128xf32>
    %61 = arith.cmpf oeq, %6, %60 : vector<8x128xf32>
    %62 = arith.mulf %6, %27 : vector<8x128xf32>
    %cst_22 = arith.constant 0.000000e+00 : f32
    %63 = vector.broadcast %cst_22 : f32 to vector<8x128xf32>
    %64 = arith.select %61, %62, %63 : vector<8x128xi1>, vector<8x128xf32>
    %c0_23 = arith.constant 0 : index
    %c0_24 = arith.constant 0 : index
    %c0_25 = arith.constant 0 : index
    %65 = vector.load %arg8[%c0_23, %c0_24, %c0_25] : memref<1x8x128xf32, #tpu.memory_space<vmem>>, vector<1x8x128xf32>
    %66 = vector.shape_cast %65 : vector<1x8x128xf32> to vector<8x128xf32>
    %67 = vector.shape_cast %64 : vector<8x128xf32> to vector<1x8x128xf32>
    tpu.vector_store %arg8[%c0_23, %c0_24, %c0_25], %67 {strides = array<i32>} : memref<1x8x128xf32, #tpu.memory_space<vmem>>, vector<1x8x128xf32>,
    return
  }
  func.func @transform_0(%arg0: i32, %arg1: i32) -> (i32, i32) {
    %c0_i32 = arith.constant 0 : i32
    %c0_i32_0 = arith.constant 0 : i32
    %c0_i32_1 = arith.constant 0 : i32
    return %c0_i32, %c0_i32_0 : i32, i32
  }
  func.func @transform_1(%arg0: i32, %arg1: i32) -> (i32, i32) {
    %c0_i32 = arith.constant 0 : i32
    %c0_i32_0 = arith.constant 0 : i32
    %c0_i32_1 = arith.constant 0 : i32
    return %c0_i32, %c0_i32_0 : i32, i32
  }
  func.func @transform_2(%arg0: i32, %arg1: i32) -> (i32, i32) {
    %c0_i32 = arith.constant 0 : i32
    %c0_i32_0 = arith.constant 0 : i32
    return %arg1, %c0_i32 : i32, i32
  }
  func.func @transform_3(%arg0: i32, %arg1: i32) -> (i32, i32, i32) {
    %c1_i32 = arith.constant 1 : i32
    %0 = arith.addi %arg1, %c1_i32 : i32
    %c0_i32 = arith.constant 0 : i32
    %c0_i32_0 = arith.constant 0 : i32
    return %arg0, %0, %c0_i32 : i32, i32, i32
  }
  func.func @transform_4(%arg0: i32, %arg1: i32) -> (i32, i32, i32) {
    %c1_i32 = arith.constant 1 : i32
    %0 = arith.addi %arg1, %c1_i32 : i32
    %c0_i32 = arith.constant 0 : i32
    %c0_i32_0 = arith.constant 0 : i32
    return %arg0, %0, %c0_i32 : i32, i32, i32
  }
  func.func @transform_5(%arg0: i32, %arg1: i32) -> (i32, i32, i32) {
    %c0_i32 = arith.constant 0 : i32
    %c0_i32_0 = arith.constant 0 : i32
    return %arg0, %arg1, %c0_i32 : i32, i32, i32
  }
  func.func @transform_6(%arg0: i32, %arg1: i32) -> (i32, i32, i32) {
    %c0_i32 = arith.constant 0 : i32
    %c0_i32_0 = arith.constant 0 : i32
    return %arg0, %arg1, %c0_i32 : i32, i32, i32
  }
}

</mosaic_0001>

<llo_original>
// kernel: tpu_custom_call.1
$region0: #{tpu_custom_call.1}
  #allocation0 [shape = 'u32[]', space=smem, size = 0x4, offset = 0x4, fixed_abs, tag = 'smem constant byte address 0x4 - core index']
  #allocation1 [shape = 'u32[144,128]{1,0:T(1,128)}', space=vmem, size = 0x12000, scoped, tag = 'internal scratch']
  %s0 = inlined_call_operand.hbm [shape: bf16[96,128], index: 0, kind: input, shape index: {}]
  %s1 = inlined_call_operand.vmem [shape: f32[4,128], index: 1, kind: input, shape index: {}]
  %s2 = inlined_call_operand.vmem [shape: f32[8,1], index: 2, kind: input, shape index: {}]
  %s3 = inlined_call_operand.hbm [shape: f32[2,24,32], index: 3, kind: input, shape index: {}]
  %s4 = inlined_call_operand.hbm [shape: f32[2,24,32], index: 4, kind: input, shape index: {}]
  %s5 = inlined_call_operand.vmem [shape: f32[2,8,128], index: 5, kind: input, shape index: {}]
  %s6 = inlined_call_operand.hbm [shape: f32[2,8,128], index: 6, kind: output, shape index: {}]
  %s7 = sld [smem:[#allocation0]]
  $region69: #{tpu_custom_call.1} parent=0
    _
  %s9 = ssub.s32 1, %s7
  %s10 = scalar_select 0, %s9, %s7
  $region1: #{tpu_custom_call.1} parent=0
    #allocation2 [shape = 'u8[24576]{0}', space=vmem, size = 0x6000, scoped, tag = 'input window, operand 0, single buffered']
    #allocation3 [shape = 's32[2]{0}', space=sflag, size = 0x8, scoped, tag = 'scoped memory for tpu_custom_call.1']
    #allocation4 [shape = 's32[2]{0}', space=sflag, size = 0x8, scoped, tag = 'scoped memory for tpu_custom_call.1']
    #allocation5 [shape = 'u8[8192]{0}', space=vmem, size = 0x2000, scoped, tag = 'input window, operand 3']
    #allocation6 [shape = 's32[2]{0}', space=sflag, size = 0x8, scoped, tag = 'scoped memory for tpu_custom_call.1']
    #allocation7 [shape = 'u8[8192]{0}', space=vmem, size = 0x2000, scoped, tag = 'input window, operand 4']
    #allocation8 [shape = 'u8[8192]{0}', space=vmem, size = 0x2000, scoped, tag = 'output window, operand 0']
    %11 = vsyncpa [#allocation3], 0
    %12 = vsyncpa [#allocation6], 0
    %s13 = scalar_lea.sflag [#allocation6], 1
    %14 = vsyncpa %s13, 0
    %15 = vsyncpa [#allocation4], 0
    %s16 = scalar_lea.sflag [#allocation4], 1
    %17 = vsyncpa %s16, 0
    loop: start=0, step=1, limit=4
    $region2: #{tpu_custom_call.1} parent=1 // loop_pre_header
      _
    $region3: #{tpu_custom_call.1} parent=1 // loop_header
      %s19 = sphi 0, %s23
      %p20 = scmp.ge.s32.totalorder %s19, 4
      %s26 = sphi 0, %s38
      %s27 = sphi 0, %s34
      %s28 = sphi 0, %s26
      %s29 = sphi 0, %s27
      %s30 = sphi 0, %s28
      %s31 = sphi 0, %s29
      %s39 = sphi 0, %s39
      %s41 = sphi 0, %s39
      %s42 = sphi 0, %s41
      %s56 = sphi 0, %s42
      %s60 = sphi 0, %s60
      %s62 = sphi 0, %s60
      %s63 = sphi 0, %s62
      %s77 = sphi 0, %s63
      %s83 = sphi 0, %s85
      %s86 = sphi 0, %s83
      %s87 = sphi 0, %s86
      %s103 = sphi 0, %s87
      %s113 = sphi 0, %s115
      %s116 = sphi 0, %s113
      %s117 = sphi 0, %s116
      %s133 = sphi 0, %s117
      %s143 = sphi 0, %s145
      %s146 = sphi 0, %s143
      %s147 = sphi 0, %s146
      %s163 = sphi 0, %s147
      %s171 = sphi 0, %s173
      %s174 = sphi 0, %s171
      %s175 = sphi 0, %s174
      %s191 = sphi 0, %s175
      %s199 = sphi 0, %s201
      %s202 = sphi 0, %s199
      %s203 = sphi 0, %s202
      %s219 = sphi 0, %s203
    $region4: #{tpu_custom_call.1} parent=1 // loop_header_branch
      %22 = sbr.rel (%p20) target = $region8
    $region5: #{tpu_custom_call.1} parent=1 // loop_body
      %s24 = ssub.s32 %s19, 1
      %s25 = ssub.s32 %s19, 2
      %s32 = sadd.s32 1, %s27
      %p33 = scmp.ge.s32.totalorder %s32, 1
      %s34 = scalar_select %p33, 0, %s32
      %s35 = sadd.s32 1, %s26
      %s36 = scalar_select %p33, %s35, %s26
      %p37 = scmp.ge.s32.totalorder %s36, 2
      %s38 = scalar_select %p37, 0, %s36
      %s40 = sadd.s32 %s39, 1
      %p43 = scmp.eq.s32.totalorder %s19, 1
      %p44 = scmp.ne.s32.totalorder %s39, %s41
      %p45 = scmp.eq.s32.totalorder %s19, 0
      %p46 = por %p44, %p45
      %p47 = scmp.ne.s32.totalorder %s39, %s41
      %p48 = scmp.eq.s32.totalorder %s24, 1
      %p49 = por %p47, %p48
      %p50 = scmp.ne.s32.totalorder %s41, %s42
      %p51 = scmp.eq.s32.totalorder %s24, 0
      %p52 = por %p50, %p51
      %p53 = scmp.ne.s32.totalorder %s41, %s42
      %p54 = scmp.eq.s32.totalorder %s25, 1
      %p55 = por %p53, %p54
      %p57 = scmp.ne.s32.totalorder %s42, %s56
      %p58 = scmp.eq.s32.totalorder %s25, 0
      %p59 = por %p57, %p58
      %s61 = sadd.s32 %s60, 1
      %p64 = scmp.eq.s32.totalorder %s19, 1
      %p65 = scmp.ne.s32.totalorder %s60, %s62
      %p66 = scmp.eq.s32.totalorder %s19, 0
      %p67 = por %p65, %p66
      %p68 = scmp.ne.s32.totalorder %s60, %s62
      %p69 = scmp.eq.s32.totalorder %s24, 1
      %p70 = por %p68, %p69
      %p71 = scmp.ne.s32.totalorder %s62, %s63
      %p72 = scmp.eq.s32.totalorder %s24, 0
      %p73 = por %p71, %p72
      %p74 = scmp.ne.s32.totalorder %s62, %s63
      %p75 = scmp.eq.s32.totalorder %s25, 1
      %p76 = por %p74, %p75
      %p78 = scmp.ne.s32.totalorder %s63, %s77
      %p79 = scmp.eq.s32.totalorder %s25, 0
      %p80 = por %p78, %p79
      %s81 = ssub.s32 %s27, %s34
      %p82 = scmp.eq.s32.totalorder %s81, 0
      %s84 = sadd.s32 %s83, 1
      %s85 = scalar_select %p82, %s83, %s84
      %p88 = pneg %p82
      %p89 = scmp.eq.s32.totalorder %s19, 1
      %p90 = por %p88, %p89
      %p91 = scmp.ne.s32.totalorder %s83, %s86
      %p92 = scmp.eq.s32.totalorder %s19, 0
      %p93 = por %p91, %p92
      %p94 = scmp.ne.s32.totalorder %s83, %s86
      %p95 = scmp.eq.s32.totalorder %s24, 1
      %p96 = por %p94, %p95
      %p97 = scmp.ne.s32.totalorder %s86, %s87
      %p98 = scmp.eq.s32.totalorder %s24, 0
      %p99 = por %p97, %p98
      %p100 = scmp.ne.s32.totalorder %s86, %s87
      %p101 = scmp.eq.s32.totalorder %s25, 1
      %p102 = por %p100, %p101
      %p104 = scmp.ne.s32.totalorder %s87, %s103
      %p105 = scmp.eq.s32.totalorder %s25, 0
      %p106 = por %p104, %p105
      %s107 = sadd.s32 %s27, 1
      %s108 = sadd.s32 %s34, 1
      %s109 = ssub.s32 %s26, %s38
      %s110 = ssub.s32 %s107, %s108
      %s111 = sor.u32 %s109, %s110
      %p112 = scmp.eq.s32.totalorder %s111, 0
      %s114 = sadd.s32 %s113, 1
      %s115 = scalar_select %p112, %s113, %s114
      %p118 = pneg %p112
      %p119 = scmp.eq.s32.totalorder %s19, 1
      %p120 = por %p118, %p119
      %p121 = scmp.ne.s32.totalorder %s113, %s116
      %p122 = scmp.eq.s32.totalorder %s19, 0
      %p123 = por %p121, %p122
      %p124 = scmp.ne.s32.totalorder %s113, %s116
      %p125 = scmp.eq.s32.totalorder %s24, 1
      %p126 = por %p124, %p125
      %p127 = scmp.ne.s32.totalorder %s116, %s117
      %p128 = scmp.eq.s32.totalorder %s24, 0
      %p129 = por %p127, %p128
      %p130 = scmp.ne.s32.totalorder %s116, %s117
      %p131 = scmp.eq.s32.totalorder %s25, 1
      %p132 = por %p130, %p131
      %p134 = scmp.ne.s32.totalorder %s117, %s133
      %p135 = scmp.eq.s32.totalorder %s25, 0
      %p136 = por %p134, %p135
      %s137 = sadd.s32 %s27, 1
      %s138 = sadd.s32 %s34, 1
      %s139 = ssub.s32 %s26, %s38
      %s140 = ssub.s32 %s137, %s138
      %s141 = sor.u32 %s139, %s140
      %p142 = scmp.eq.s32.totalorder %s141, 0
      %s144 = sadd.s32 %s143, 1
      %s145 = scalar_select %p142, %s143, %s144
      %p148 = pneg %p142
      %p149 = scmp.eq.s32.totalorder %s19, 1
      %p150 = por %p148, %p149
      %p151 = scmp.ne.s32.totalorder %s143, %s146
      %p152 = scmp.eq.s32.totalorder %s19, 0
      %p153 = por %p151, %p152
      %p154 = scmp.ne.s32.totalorder %s143, %s146
      %p155 = scmp.eq.s32.totalorder %s24, 1
      %p156 = por %p154, %p155
      %p157 = scmp.ne.s32.totalorder %s146, %s147
      %p158 = scmp.eq.s32.totalorder %s24, 0
      %p159 = por %p157, %p158
      %p160 = scmp.ne.s32.totalorder %s146, %s147
      %p161 = scmp.eq.s32.totalorder %s25, 1
      %p162 = por %p160, %p161
      %p164 = scmp.ne.s32.totalorder %s147, %s163
      %p165 = scmp.eq.s32.totalorder %s25, 0
      %p166 = por %p164, %p165
      %s167 = ssub.s32 %s26, %s38
      %s168 = ssub.s32 %s27, %s34
      %s169 = sor.u32 %s167, %s168
      %p170 = scmp.eq.s32.totalorder %s169, 0
      %s172 = sadd.s32 %s171, 1
      %s173 = scalar_select %p170, %s171, %s172
      %p176 = pneg %p170
      %p177 = scmp.eq.s32.totalorder %s19, 1
      %p178 = por %p176, %p177
      %p179 = scmp.ne.s32.totalorder %s171, %s174
      %p180 = scmp.eq.s32.totalorder %s19, 0
      %p181 = por %p179, %p180
      %p182 = scmp.ne.s32.totalorder %s171, %s174
      %p183 = scmp.eq.s32.totalorder %s24, 1
      %p184 = por %p182, %p183
      %p185 = scmp.ne.s32.totalorder %s174, %s175
      %p186 = scmp.eq.s32.totalorder %s24, 0
      %p187 = por %p185, %p186
      %p188 = scmp.ne.s32.totalorder %s174, %s175
      %p189 = scmp.eq.s32.totalorder %s25, 1
      %p190 = por %p188, %p189
      %p192 = scmp.ne.s32.totalorder %s175, %s191
      %p193 = scmp.eq.s32.totalorder %s25, 0
      %p194 = por %p192, %p193
      %s195 = ssub.s32 %s26, %s38
      %s196 = ssub.s32 %s27, %s34
      %s197 = sor.u32 %s195, %s196
      %p198 = scmp.eq.s32.totalorder %s197, 0
      %s200 = sadd.s32 %s199, 1
      %s201 = scalar_select %p198, %s199, %s200
      %p204 = pneg %p198
      %p205 = scmp.eq.s32.totalorder %s19, 1
      %p206 = por %p204, %p205
      %p207 = scmp.ne.s32.totalorder %s199, %s202
      %p208 = scmp.eq.s32.totalorder %s19, 0
      %p209 = por %p207, %p208
      %p210 = scmp.ne.s32.totalorder %s199, %s202
      %p211 = scmp.eq.s32.totalorder %s24, 1
      %p212 = por %p210, %p211
      %p213 = scmp.ne.s32.totalorder %s202, %s203
      %p214 = scmp.eq.s32.totalorder %s24, 0
      %p215 = por %p213, %p214
      %p216 = scmp.ne.s32.totalorder %s202, %s203
      %p217 = scmp.eq.s32.totalorder %s25, 1
      %p218 = por %p216, %p217
      %p220 = scmp.ne.s32.totalorder %s203, %s219
      %p221 = scmp.eq.s32.totalorder %s25, 0
      %p222 = por %p220, %p221
      %p223 = scmp.le.s32.totalorder 1, %s19
      %p224 = scmp.lt.s32.totalorder %s19, 3
      %p225 = pnand %p223, %p224
      %p226 = pneg %p225
      // Predicated region
      $region9: #{tpu_custom_call.1} parent=5 // pred_check
        _
      $region10: #{tpu_custom_call.1} parent=5 // pred_check_branch
        %228 = sbr.rel (%p225) target = $region12
      $region11: #{tpu_custom_call.1} parent=5 // pred_region
        %s229 = ssub.s32 %s19, 1
        // Predicated region
        $region13: #{tpu_custom_call.1} parent=11 // pred_check
          %p230 = pneg %p52
        $region14: #{tpu_custom_call.1} parent=11 // pred_check_branch
          %232 = sbr.rel (%p230) target = $region16
        $region15: #{tpu_custom_call.1} parent=11 // pred_region
          %s234 = ssub.s32 768, 768
          %235 = vsyncadd [#allocation3], %s234
          %s236 = sshll.u32 [#allocation2], 4
          %s237 = int_to_ptr.vmem [resolvable:$true] %s236
          %242 = dma.hbm_to_vmem [thread:$0]  %s0, 768, %s237, [#allocation3], 64, 64, 4
        $region16: #{tpu_custom_call.1} parent=11 // pred_fallthru
          _
        // Predicated region
        $region17: #{tpu_custom_call.1} parent=11 // pred_check
          %p243 = pneg %p73
        $region18: #{tpu_custom_call.1} parent=11 // pred_check_branch
          %245 = sbr.rel (%p243) target = $region20
        $region19: #{tpu_custom_call.1} parent=11 // pred_region
          _
        $region20: #{tpu_custom_call.1} parent=11 // pred_fallthru
          _
        // Predicated region
        $region21: #{tpu_custom_call.1} parent=11 // pred_check
          %p246 = pneg %p99
        $region22: #{tpu_custom_call.1} parent=11 // pred_check_branch
          %248 = sbr.rel (%p246) target = $region24
        $region23: #{tpu_custom_call.1} parent=11 // pred_region
          %p249 = scmp.lt.s32.totalorder %s29, 0
          %s250 = scalar_select %p249, %s29, 0
          %s251 = smul.addr %s250, 8
          %s252 = scalar_lea.vmem %s2, %s251
        $region24: #{tpu_custom_call.1} parent=11 // pred_fallthru
          _
      $region12: #{tpu_custom_call.1} parent=5 // pred_fallthru
        _
      %p253 = scmp.lt.s32.totalorder %s19, 2
      // Predicated region
      $region25: #{tpu_custom_call.1} parent=5 // pred_check
        %p254 = pneg %p253
      $region26: #{tpu_custom_call.1} parent=5 // pred_check_branch
        %256 = sbr.rel (%p254) target = $region28
      $region27: #{tpu_custom_call.1} parent=5 // pred_region
        // Predicated region
        $region29: #{tpu_custom_call.1} parent=27 // pred_check
          %p257 = pneg %p123
        $region30: #{tpu_custom_call.1} parent=27 // pred_check_branch
          %259 = sbr.rel (%p257) target = $region32
        $region31: #{tpu_custom_call.1} parent=27 // pred_region
          %s260 = sand.u32 %s19, 1
          %s261 = scalar_lea.sflag [#allocation6], %s260
          %s262 = sand.u32 %s113, 1
          %s263 = smul.addr %s262, 8
          %s264 = scalar_lea.vmem [#allocation5], %s263
          %s265 = sadd.s32 %s27, 1
          %s267 = ssub.s32 128, 128
          %268 = vsyncadd %s261, %s267
          %s269 = smul.addr %s26, 3
          %s270 = sadd.s32 %s265, %s269
          %s271 = smul.addr %s270, 128
          %s272 = scalar_lea.hbm %s3, %s271
          %s274 = sshll.u32 %s264, 4
          %s275 = int_to_ptr.vmem [resolvable:$true] %s274
          %277 = dma.hbm_to_vmem [thread:$0]  %s272, 128, %s275, %s261
        $region32: #{tpu_custom_call.1} parent=27 // pred_fallthru
          _
        // Predicated region
        $region33: #{tpu_custom_call.1} parent=27 // pred_check
          %p278 = pneg %p153
        $region34: #{tpu_custom_call.1} parent=27 // pred_check_branch
          %280 = sbr.rel (%p278) target = $region36
        $region35: #{tpu_custom_call.1} parent=27 // pred_region
          %s281 = sand.u32 %s19, 1
          %s282 = scalar_lea.sflag [#allocation6], %s281
          %s283 = sand.u32 %s143, 1
          %s284 = smul.addr %s283, 8
          %s285 = scalar_lea.vmem [#allocation7], %s284
          %s286 = sadd.s32 %s27, 1
          %s288 = ssub.s32 128, 128
          %289 = vsyncadd %s282, %s288
          %s290 = smul.addr %s26, 3
          %s291 = sadd.s32 %s286, %s290
          %s292 = smul.addr %s291, 128
          %s293 = scalar_lea.hbm %s4, %s292
          %s295 = sshll.u32 %s285, 4
          %s296 = int_to_ptr.vmem [resolvable:$true] %s295
          %298 = dma.hbm_to_vmem [thread:$0]  %s293, 128, %s296, %s282
        $region36: #{tpu_custom_call.1} parent=27 // pred_fallthru
          _
        // Predicated region
        $region37: #{tpu_custom_call.1} parent=27 // pred_check
          %p299 = pneg %p181
        $region38: #{tpu_custom_call.1} parent=27 // pred_check_branch
          %301 = sbr.rel (%p299) target = $region40
        $region39: #{tpu_custom_call.1} parent=27 // pred_region
          %p302 = scmp.lt.s32.totalorder %s26, 1
          %s303 = scalar_select %p302, %s26, 1
          %p304 = scmp.lt.s32.totalorder %s27, 0
          %s305 = scalar_select %p304, %s27, 0
          %s306 = sadd.s32 %s305, %s303
          %s307 = smul.addr %s306, 8
          %s308 = scalar_lea.vmem %s5, %s307
        $region40: #{tpu_custom_call.1} parent=27 // pred_fallthru
          _
      $region28: #{tpu_custom_call.1} parent=5 // pred_fallthru
        _
      %p309 = scmp.le.s32.totalorder 1, %s19
      %p310 = scmp.lt.s32.totalorder %s19, 3
      %p311 = pnand %p309, %p310
      %p312 = pneg %p311
      // Predicated region
      $region41: #{tpu_custom_call.1} parent=5 // pred_check
        _
      $region42: #{tpu_custom_call.1} parent=5 // pred_check_branch
        %314 = sbr.rel (%p311) target = $region44
      $region43: #{tpu_custom_call.1} parent=5 // pred_region
        %s315 = ssub.s32 %s19, 1
        // Predicated region
        $region45: #{tpu_custom_call.1} parent=43 // pred_check
          %p316 = pneg %p52
        $region46: #{tpu_custom_call.1} parent=43 // pred_check_branch
          %318 = sbr.rel (%p316) target = $region48
        $region47: #{tpu_custom_call.1} parent=43 // pred_region
          %319 = dma.done [#allocation3], 768
        $region48: #{tpu_custom_call.1} parent=43 // pred_fallthru
          _
        %s320 = sand.u32 %s24, 1
        %s321 = scalar_lea.sflag [#allocation6], %s320
        %s322 = sand.u32 %s116, 1
        %s323 = smul.addr %s322, 8
        %s324 = scalar_lea.vmem [#allocation5], %s323
        // Predicated region
        $region49: #{tpu_custom_call.1} parent=43 // pred_check
          %p325 = pneg %p129
        $region50: #{tpu_custom_call.1} parent=43 // pred_check_branch
          %327 = sbr.rel (%p325) target = $region52
        $region51: #{tpu_custom_call.1} parent=43 // pred_region
          %328 = dma.done %s321, 128
        $region52: #{tpu_custom_call.1} parent=43 // pred_fallthru
          _
        %s329 = sand.u32 %s24, 1
        %s330 = scalar_lea.sflag [#allocation6], %s329
        %s331 = sand.u32 %s146, 1
        %s332 = smul.addr %s331, 8
        %s333 = scalar_lea.vmem [#allocation7], %s332
        // Predicated region
        $region53: #{tpu_custom_call.1} parent=43 // pred_check
          %p334 = pneg %p159
        $region54: #{tpu_custom_call.1} parent=43 // pred_check_branch
          %336 = sbr.rel (%p334) target = $region56
        $region55: #{tpu_custom_call.1} parent=43 // pred_region
          %337 = dma.done %s330, 128
        $region56: #{tpu_custom_call.1} parent=43 // pred_fallthru
          _
        %p338 = pneg %p52
        %p339 = pneg %p49
        %p340 = pneg %p73
        %p341 = pneg %p70
        %p342 = scmp.lt.s32.totalorder %s29, 0
        %s343 = scalar_select %p342, %s29, 0
        %s344 = smul.addr %s343, 8
        %s345 = scalar_lea.vmem %s2, %s344
        %p346 = pneg %p99
        %p347 = pneg %p96
        %s348 = sand.u32 %s24, 1
        %s349 = scalar_lea.sflag [#allocation6], %s348
        %s350 = sand.u32 %s116, 1
        %s351 = smul.addr %s350, 8
        %s352 = scalar_lea.vmem [#allocation5], %s351
        %p353 = pneg %p129
        %p354 = pneg %p126
        %s355 = sand.u32 %s24, 1
        %s356 = scalar_lea.sflag [#allocation6], %s355
        %s357 = sand.u32 %s146, 1
        %s358 = smul.addr %s357, 8
        %s359 = scalar_lea.vmem [#allocation7], %s358
        %p360 = pneg %p159
        %p361 = pneg %p156
        %p362 = scmp.lt.s32.totalorder %s28, 1
        %s363 = scalar_select %p362, %s28, 1
        %p364 = scmp.lt.s32.totalorder %s29, 0
        %s365 = scalar_select %p364, %s29, 0
        %s366 = sadd.s32 %s365, %s363
        %s367 = smul.addr %s366, 8
        %s368 = scalar_lea.vmem %s5, %s367
        %p369 = pneg %p187
        %p370 = pneg %p184
        %p371 = pneg %p215
        %p372 = pneg %p212
        %s373 = sand.u32 %s202, 1
        %s374 = scalar_lea.sflag [#allocation4], %s373
        %s375 = sand.u32 %s202, 1
        %s376 = smul.addr %s375, 8
        %s377 = scalar_lea.vmem [#allocation8], %s376
        %p378 = scmp.lt.s32.totalorder %s29, 0
        %s379 = scalar_select %p378, %s29, 0
        %s380 = smul.addr %s379, 8
        %s381 = scalar_lea.vmem %s2, %s380
        %s382 = sadd.s32 %s29, 1
        %s383 = sadd.s32 %s29, 1
        %p384 = scmp.lt.s32.totalorder %s28, 1
        %s385 = scalar_select %p384, %s28, 1
        %p386 = scmp.lt.s32.totalorder %s29, 0
        %s387 = scalar_select %p386, %s29, 0
        %s388 = sadd.s32 %s387, %s385
        %s389 = smul.addr %s388, 8
        %s390 = scalar_lea.vmem %s5, %s389
        %v392 = vld [vmem:[%s381] sm:$0xff]
        %v393 = vld [vmem:[%s324] sm:$0xff]
        %v394 = vld [vmem:[%s333] sm:$0xff]
        %v395 = vld [vmem:[%s390] sm:$0xff]
        %vm396 = vcmp.ge.f32.partialorder %v394, 0.0
        %v397 = vsel %vm396, 1.0, -1.0
        %399 = vset.pattern.permute.xlu0 0
        %400 = vperm.xlu0 %399, %v392
        %v401 = vpop.permute.xlu0 %400
        %v403 = vmul.f32 %v393, %v401
        %v404 = vmul.f32 %v397, 0.01
        %v405 = vadd.f32 %v394, %v404
        %v406 = vrcp.pop %v405
        %v407 = vmul.f32 %v403, %v406
        %v408 = vpack.c.bf16 %v407, %v407
        %v409 = vunpack.c.l.bf16 %v408
        %v410 = vsub.f32 %v407, %v409
        %v411 = vpack.c.bf16 %v410, %v410
        %v412 = vunpack.c.l.bf16 %v411
        %v413 = vsub.f32 %v410, %v412
        %v414 = vpack.c.bf16 %v413, %v413
        %416 = vrot.lane.b32.xlu0 %v411, 32
        %v417 = vpop.permute.xlu0 %416
        %419 = vrot.lane.b32.xlu0 %v414, 64
        %v420 = vpop.permute.xlu0 %419
        %vm421 = vcmask 261120
        %v424 = vsel %vm421, %v408, %v417
        %vm425 = vcmask 523264
        %v427 = vsel %vm425, %v424, %v420
        %v428 = vld [vmem:[#allocation2] sm:$0xf]
        %v429 = vld [vmem:[#allocation2 + $0x4] sm:$0xf]
        %v430 = vld [vmem:[#allocation2 + $0x8] sm:$0xf]
        %v431 = vld [vmem:[#allocation2 + $0xc] sm:$0xf]
        %v432 = vld [vmem:[#allocation2 + $0x10] sm:$0xf]
        %v433 = vld [vmem:[#allocation2 + $0x14] sm:$0xf]
        %v434 = vld [vmem:[#allocation2 + $0x18] sm:$0xf]
        %v435 = vld [vmem:[#allocation2 + $0x1c] sm:$0xf]
        %v436 = vld [vmem:[#allocation2 + $0x20] sm:$0xf]
        %v437 = vld [vmem:[#allocation2 + $0x24] sm:$0xf]
        %v438 = vld [vmem:[#allocation2 + $0x28] sm:$0xf]
        %v439 = vld [vmem:[#allocation2 + $0x2c] sm:$0xf]
        %v452 = vunpack.c.l.b16 %v428
        %v453 = vunpack.c.l.b16 %v429
        %v454 = vunpack.c.l.b16 %v430
        %v455 = vunpack.c.l.b16 %v431
        %v456 = vunpack.c.l.b16 %v432
        %v457 = vunpack.c.l.b16 %v433
        %v458 = vunpack.c.l.b16 %v434
        %v459 = vunpack.c.l.b16 %v435
        %v460 = vunpack.c.l.b16 %v436
        %v461 = vunpack.c.l.b16 %v437
        %v462 = vunpack.c.l.b16 %v438
        %v463 = vunpack.c.l.b16 %v439
        %v464 = vpack.c.b16 %v453, %v452
        %v465 = vpack.c.b16 %v455, %v454
        %v466 = vpack.c.b16 %v457, %v456
        %v467 = vpack.c.b16 %v459, %v458
        %v468 = vpack.c.b16 %v461, %v460
        %v469 = vpack.c.b16 %v463, %v462
        %vm476 = vcmask 785408
        %v477 = vsel %vm476, %v427, 0
        %479 = vmatprep.subr.bf16.mxu0 0
        %480 = vmatpush1.bf16.msra.mxu0 %v464
        %481 = vmatprep.subr.bf16.mxu0 0
        %482 = vmatpush1.bf16.msra.mxu0 %v465
        %483 = vmatprep.subr.bf16.mxu0 0
        %484 = vmatpush1.bf16.msra.mxu0 %v466
        %485 = vmatprep.subr.bf16.mxu0 0
        %486 = vmatpush1.bf16.msra.mxu0 %v467
        %487 = vmatprep.subr.bf16.mxu0 0
        %488 = vmatpush1.bf16.msra.mxu0 %v468
        %489 = vmatprep.subr.bf16.mxu0 0
        %490 = vmatpush1.bf16.msra.mxu0 %v469
        %491 = vmatprep.subr.bf16.mxu0 0
        %492 = vmatpush1.bf16.msra.mxu0 0
        %493 = vmatprep.subr.bf16.mxu0 0
        %494 = vmatpush1.bf16.msra.mxu0 0
        %495 = vmatprep.subr.bf16.mxu0 0
        %496 = vmatpush1.bf16.msra.mxu0 0
        %497 = vmatprep.subr.bf16.mxu0 0
        %498 = vmatpush1.bf16.msra.mxu0 0
        %499 = vmatprep.subr.bf16.mxu0 0
        %500 = vmatpush1.bf16.msra.mxu0 0
        %501 = vmatprep.subr.bf16.mxu0 0
        %502 = vmatpush1.bf16.msra.mxu0 0
        %503 = vmatprep.subr.bf16.mxu0 0
        %504 = vmatpush1.bf16.msra.mxu0 0
        %505 = vmatprep.subr.bf16.mxu0 0
        %506 = vmatpush1.bf16.msra.mxu0 0
        %507 = vmatprep.subr.bf16.mxu0 0
        %508 = vmatpush1.bf16.msra.mxu0 0
        %509 = vmatprep.subr.bf16.mxu0 0
        %510 = vmatpush1.bf16.msra.mxu0 0
        %511 = vmatprep.mubr.bf16.mxu0 0
        %512 = vmatmul.mubr.bf16.gmra.mrb[0].mxu0 %v477
        %v513 = vpop.f32.mrb[0].mxu0
        %v514 = vadd.f32 0.0, %v513
        %v515 = vpop.f32.mrb[0].mxu0
        %v516 = vpop.f32.mrb[0].mxu0
        %v517 = vpop.f32.mrb[0].mxu0
        %518 = vdwg.mxu0
        %v519 = vld [vmem:[%s1] sm:$0xf]
        %vm520 = vcmp.ne.f32.partialorder %v519, 0.0
        %521 = vrot.lane.b32.xlu0 %v395, 112
        %v522 = vpop.permute.xlu0 %521
        %v523 = vmax.f32 %v395, %v522
        %v524 = vsel %vm520, 1, 0
        %v525 = vlaneseq
        %v526 = vshrl.u32 %v525, 7
        %v527 = vsub.s32 0, %v526
        %v528 = vrot.slane %v524, %v527
        %vm529 = vcmp.eq.s32.totalorder %v528, 1
        %v530 = vsel %vm529, %v523, %v395
        %531 = vrot.lane.b32.xlu0 %v395, 16
        %v532 = vpop.permute.xlu0 %531
        %v533 = vmax.f32 %v530, %v532
        %v534 = vlaneseq
        %v535 = vshrl.u32 %v534, 7
        %v536 = vsub.s32 1, %v535
        %v537 = vrot.slane %v524, %v536
        %vm538 = vcmp.eq.s32.totalorder %v537, 1
        %v539 = vsel %vm538, %v533, %v530
        %540 = vrot.lane.b32.xlu0 %v539, 127
        %v541 = vpop.permute.xlu0 %540
        %v542 = vmax.f32 %v539, %v541
        %v543 = vlaneseq
        %v544 = vshrl.u32 %v543, 7
        %v545 = vsub.s32 2, %v544
        %v546 = vrot.slane %v524, %v545
        %vm547 = vcmp.eq.s32.totalorder %v546, 1
        %v548 = vsel %vm547, %v542, %v539
        %549 = vrot.lane.b32.xlu0 %v539, 1
        %v550 = vpop.permute.xlu0 %549
        %v551 = vmax.f32 %v548, %v550
        %v552 = vlaneseq
        %v553 = vshrl.u32 %v552, 7
        %v554 = vsub.s32 3, %v553
        %v555 = vrot.slane %v524, %v554
        %vm556 = vcmp.eq.s32.totalorder %v555, 1
        %v557 = vsel %vm556, %v551, %v548
        %vm558 = vcmp.eq.f32.partialorder %v395, %v557
        %v559 = vmul.f32 %v395, %v514
        %v560 = vsel %vm558, %v559, 0.0
        %561 = vst [vmem:[%s377] sm:$0xff] %v560
        %s562 = sand.u32 %s202, 1
        %s563 = scalar_lea.sflag [#allocation4], %s562
        %s564 = sand.u32 %s202, 1
        %s565 = smul.addr %s564, 8
        %s566 = scalar_lea.vmem [#allocation8], %s565
        // Predicated region
        $region57: #{tpu_custom_call.1} parent=43 // pred_check
          %p567 = pneg %p212
        $region58: #{tpu_custom_call.1} parent=43 // pred_check_branch
          %569 = sbr.rel (%p567) target = $region60
        $region59: #{tpu_custom_call.1} parent=43 // pred_region
          %s571 = ssub.s32 128, 128
          %572 = vsyncadd %s563, %s571
          %s573 = sadd.s32 %s29, %s28
          %s574 = smul.addr %s573, 128
          %s575 = scalar_lea.hbm %s6, %s574
          %s577 = sshll.u32 %s566, 4
          %s578 = int_to_ptr.vmem [resolvable:$true] %s577
          %580 = dma.vmem_to_hbm [thread:$0]  %s578, 128, %s575, %s563
        $region60: #{tpu_custom_call.1} parent=43 // pred_fallthru
          _
      $region44: #{tpu_custom_call.1} parent=5 // pred_fallthru
        _
      %p581 = scmp.le.s32.totalorder 2, %s19
      // Predicated region
      $region61: #{tpu_custom_call.1} parent=5 // pred_check
        %p582 = pneg %p581
      $region62: #{tpu_custom_call.1} parent=5 // pred_check_branch
        %584 = sbr.rel (%p582) target = $region64
      $region63: #{tpu_custom_call.1} parent=5 // pred_region
        %s585 = ssub.s32 %s19, 2
        // Predicated region
        $region65: #{tpu_custom_call.1} parent=63 // pred_check
          %p586 = pneg %p218
        $region66: #{tpu_custom_call.1} parent=63 // pred_check_branch
          %588 = sbr.rel (%p586) target = $region68
        $region67: #{tpu_custom_call.1} parent=63 // pred_region
          %s589 = sand.u32 %s203, 1
          %s590 = scalar_lea.sflag [#allocation4], %s589
          %s591 = sand.u32 %s203, 1
          %s592 = smul.addr %s591, 8
          %s593 = scalar_lea.vmem [#allocation8], %s592
          %594 = dma.done %s590, 128
        $region68: #{tpu_custom_call.1} parent=63 // pred_fallthru
          _
      $region64: #{tpu_custom_call.1} parent=5 // pred_fallthru
        _
    $region6: #{tpu_custom_call.1} parent=1 // loop_footer
      %s23 = sadd.s32 1, %s19
    $region7: #{tpu_custom_call.1} parent=1 // loop_footer_branch
      %18 = sbr.rel target = $region3
    $region8: #{tpu_custom_call.1} parent=1 // loop_exit
      _
    %595 = vsyncpa [#allocation3], 1
    %s596 = scalar_lea.sflag [#allocation3], 1
    %597 = vsyncpa %s596, 1
    %598 = vsyncpa [#allocation6], 1
    %s599 = scalar_lea.sflag [#allocation6], 1
    %600 = vsyncpa %s599, 1
    %601 = vsyncpa [#allocation4], 1
    %s602 = scalar_lea.sflag [#allocation4], 1
    %603 = vsyncpa %s602, 1

</llo_original>
